<compile_context>
chip_gen: v7x
topology: tpu7x:2x2x1
jax: 0.10.0
libtpu: 0.0.40
codegen_flags: <defaults>
</compile_context>

<pallas_src>
import functools

import jax
import jax.numpy as jnp
from jax.experimental import pallas as pl
from jax.experimental.pallas import tpu as pltpu


# ---------------------------------------------------------------------------
# Tiling helpers
# ---------------------------------------------------------------------------
_TARGET_ROW_BLOCK = 1024   # ~85%+ of HBM roofline per measured data
_TARGET_COL_BLOCK = 1024   # weight output / hidden column tile
_LANE = 128


def _round_up(x, m):
    return ((x + m - 1) // m) * m


def _sublane(dtype):
    # rows per vreg sublane group: 8 for f32, 16 for bf16, 32 for int8/fp8
    return max(8, 32 // jnp.dtype(dtype).itemsize)


@functools.lru_cache(maxsize=None)
def _vmem_limits():
    """Generation-aware (limit, budget): v5e/v6e 128 MiB phys -> 96/72 MiB,
    v7x 64 MiB phys -> 48/36 MiB."""
    try:
        phys = int(pltpu.get_tpu_info().vmem_capacity_bytes)
        phys = max(32 * 1024 * 1024, min(phys, 128 * 1024 * 1024))
    except Exception:  # fall back to the smallest (v7x-sized) VMEM
        phys = 64 * 1024 * 1024
    limit = min((phys * 3) // 4, 96 * 1024 * 1024)
    budget = (limit * 3) // 4
    return limit, budget


def _pick_row_block(rows, stream_bytes_per_row, scratch_bytes_per_row,
                    resident_bytes, dtype, budget):
    """Largest sublane-aligned row block keeping (double-buffered streamed
    blocks + scratch + double-buffered resident weight blocks) in budget."""
    sub = _sublane(dtype)
    denom = 2 * stream_bytes_per_row + scratch_bytes_per_row
    avail = max(budget - 2 * resident_bytes, sub * denom)
    rb = min(_TARGET_ROW_BLOCK, avail // denom, _round_up(rows, sub))
    return max(sub, (rb // sub) * sub)


def _pick_divisor_block(total, target, quantum=_LANE):
    """Largest multiple of `quantum` that divides `total` and is <= target;
    falls back to `total` (full extent is always a legal block)."""
    if total <= max(target, quantum):
        return total
    d = (min(target, total) // quantum) * quantum
    while d >= quantum:
        if total % d == 0:
            return d
        d -= quantum
    return total


def _pick_col_block(total, resident_bytes_per_col, budget):
    """Column tile for a resident weight so 2x its slice stays < budget/2."""
    cb = _pick_divisor_block(total, _TARGET_COL_BLOCK)
    while cb > _LANE and 2 * cb * resident_bytes_per_col > budget // 2:
        nb = _pick_divisor_block(total, cb - _LANE)
        if nb == cb or nb == total:
            break
        cb = nb
    return cb


def _compiler_params(semantics):
    limit, _ = _vmem_limits()
    return pltpu.CompilerParams(dimension_semantics=semantics,
                                vmem_limit_bytes=limit)


# ---------------------------------------------------------------------------
# In-kernel math helpers (f32)
# ---------------------------------------------------------------------------
def _layernorm_f32(x, gamma, beta, eps):
    mu = jnp.mean(x, axis=-1, keepdims=True)
    xc = x - mu
    var = jnp.mean(xc * xc, axis=-1, keepdims=True)
    return xc * jax.lax.rsqrt(var + eps) * gamma + beta


def _gelu_exact_f32(x):
    # erf-form GELU matching torch.nn.GELU(); erf via the Abramowitz-Stegun
    # 7.1.26 polynomial (|err| <= 1.5e-7, i.e. float32-exact here).
    # TODO(synk): switch to jax.lax.erf once its Mosaic lowering is confirmed.
    z = jnp.abs(x) * 0.7071067811865476
    t = 1.0 / (1.0 + 0.3275911 * z)
    poly = ((((1.061405429 * t - 1.453152027) * t + 1.421413741) * t
             - 0.284496736) * t + 0.254829592) * t
    erf_abs = 1.0 - poly * jnp.exp(-z * z)
    erf = jnp.where(x >= 0, erf_abs, -erf_abs)
    return 0.5 * x * (1.0 + erf)


# ---------------------------------------------------------------------------
# Fused LayerNorm + Linear (used for LN1 -> qkv).  Grid: (row blocks, col blocks)
# ---------------------------------------------------------------------------
def _ln_linear_nobias_kernel(x_ref, g_ref, b_ref, w_ref, o_ref, ln_sc, *, eps):
    @pl.when(pl.program_id(1) == 0)
    def _():
        ln_sc[...] = _layernorm_f32(x_ref[...].astype(jnp.float32),
                                    g_ref[...], b_ref[...], eps)
    y = jnp.dot(ln_sc[...].astype(w_ref.dtype), w_ref[...],
                preferred_element_type=jnp.float32)
    o_ref[...] = y.astype(o_ref.dtype)


def _ln_linear_bias_kernel(x_ref, g_ref, b_ref, w_ref, bias_ref, o_ref, ln_sc,
                           *, eps):
    @pl.when(pl.program_id(1) == 0)
    def _():
        ln_sc[...] = _layernorm_f32(x_ref[...].astype(jnp.float32),
                                    g_ref[...], b_ref[...], eps)
    y = jnp.dot(ln_sc[...].astype(w_ref.dtype), w_ref[...],
                preferred_element_type=jnp.float32)
    o_ref[...] = (y + bias_ref[...]).astype(o_ref.dtype)


def ln_linear(x2d, gamma, beta, w, bias=None, *, eps=1e-5):
    rows, kdim = x2d.shape
    kdim2, ndim = w.shape
    assert kdim == kdim2
    _, budget = _vmem_limits()
    isz = jnp.dtype(x2d.dtype).itemsize
    wsz = jnp.dtype(w.dtype).itemsize

    cb = _pick_col_block(ndim, kdim * wsz, budget)
    resident = kdim * cb * wsz + 2 * kdim * 4 + (cb * 4 if bias is not None else 0)
    stream = kdim * isz + cb * isz
    scratch = kdim * 4                               # cached LN row block (f32)
    rb = _pick_row_block(rows, stream, scratch, resident, x2d.dtype, budget)
    grid = (pl.cdiv(rows, rb), ndim // cb)           # col axis must be innermost

    g2d = gamma.astype(jnp.float32).reshape(1, kdim)   # hoisted casts, resident
    be2d = beta.astype(jnp.float32).reshape(1, kdim)

    in_specs = [
        pl.BlockSpec((rb, kdim), lambda i, j: (i, 0)),
        pl.BlockSpec((1, kdim), lambda i, j: (0, 0)),
        pl.BlockSpec((1, kdim), lambda i, j: (0, 0)),
        pl.BlockSpec((kdim, cb), lambda i, j: (0, j)),
    ]
    args = [x2d, g2d, be2d, w]
    if bias is not None:
        in_specs.append(pl.BlockSpec((1, cb), lambda i, j: (0, j)))
        args.append(bias.astype(jnp.float32).reshape(1, ndim))
        kernel = functools.partial(_ln_linear_bias_kernel, eps=eps)
    else:                                            # qkv_bias=False: no zero bias
        kernel = functools.partial(_ln_linear_nobias_kernel, eps=eps)

    return pl.pallas_call(
        kernel,
        out_shape=jax.ShapeDtypeStruct((rows, ndim), x2d.dtype),
        grid_spec=pltpu.PrefetchScalarGridSpec(
            num_scalar_prefetch=0,
            grid=grid,
            in_specs=in_specs,
            out_specs=pl.BlockSpec((rb, cb), lambda i, j: (i, j)),
            scratch_shapes=[pltpu.VMEM((rb, kdim), jnp.float32)],
        ),
        compiler_params=_compiler_params(("parallel", "arbitrary")),
    )(*args)


# ---------------------------------------------------------------------------
# Linear + bias + residual (used for attention proj).  Grid: (rows, cols)
# ---------------------------------------------------------------------------
def _linear_residual_kernel(x_ref, w_ref, b_ref, r_ref, o_ref):
    y = jnp.dot(x_ref[...].astype(w_ref.dtype), w_ref[...],
                preferred_element_type=jnp.float32)
    o_ref[...] = (y + b_ref[...] + r_ref[...].astype(jnp.float32)).astype(o_ref.dtype)


def linear_residual(x2d, w, bias, residual):
    rows, kdim = x2d.shape
    kdim2, ndim = w.shape
    assert kdim == kdim2
    _, budget = _vmem_limits()
    isz = jnp.dtype(x2d.dtype).itemsize
    wsz = jnp.dtype(w.dtype).itemsize

    cb = _pick_col_block(ndim, kdim * wsz, budget)
    resident = kdim * cb * wsz + cb * 4
    stream = kdim * isz + cb * isz + cb * jnp.dtype(residual.dtype).itemsize
    rb = _pick_row_block(rows, stream, 0, resident, x2d.dtype, budget)
    grid = (pl.cdiv(rows, rb), ndim // cb)
    b2d = bias.astype(jnp.float32).reshape(1, ndim)

    return pl.pallas_call(
        _linear_residual_kernel,
        out_shape=jax.ShapeDtypeStruct((rows, ndim), x2d.dtype),
        grid_spec=pltpu.PrefetchScalarGridSpec(
            num_scalar_prefetch=0,
            grid=grid,
            in_specs=[
                pl.BlockSpec((rb, kdim), lambda i, j: (i, 0)),
                pl.BlockSpec((kdim, cb), lambda i, j: (0, j)),
                pl.BlockSpec((1, cb), lambda i, j: (0, j)),
                pl.BlockSpec((rb, cb), lambda i, j: (i, j)),
            ],
            out_specs=pl.BlockSpec((rb, cb), lambda i, j: (i, j)),
        ),
        compiler_params=_compiler_params(("parallel", "arbitrary")),
    )(x2d, w, b2d, residual)


# ---------------------------------------------------------------------------
# Fused MLP branch: out = x + fc2(GELU(fc1(LN2(x)))).  Grid: (rows, hidden)
# Hidden activation never leaves VMEM; fc1/fc2 tiled along the hidden dim.
# ---------------------------------------------------------------------------
def _mlp_kernel(x_ref, g_ref, b_ref, w1_ref, b1_ref, w2_ref, b2_ref, o_ref,
                ln_sc, acc_sc, *, eps):
    k = pl.program_id(1)

    @pl.when(k == 0)
    def _():
        x = x_ref[...].astype(jnp.float32)
        ln_sc[...] = _layernorm_f32(x, g_ref[...], b_ref[...], eps)
        acc_sc[...] = x + b2_ref[...]                 # residual + fc2 bias

    h = jnp.dot(ln_sc[...].astype(w1_ref.dtype), w1_ref[...],
                preferred_element_type=jnp.float32) + b1_ref[...]
    h = _gelu_exact_f32(h)
    acc_sc[...] += jnp.dot(h.astype(w2_ref.dtype), w2_ref[...],
                           preferred_element_type=jnp.float32)

    @pl.when(k == pl.num_programs(1) - 1)
    def _():
        o_ref[...] = acc_sc[...].astype(o_ref.dtype)


def mlp_block(x2d, gamma, beta, w1, b1, w2, b2, *, eps=1e-5):
    rows, dim = x2d.shape
    dim1, hidden = w1.shape
    assert dim1 == dim and w2.shape == (hidden, dim)
    _, budget = _vmem_limits()
    isz = jnp.dtype(x2d.dtype).itemsize
    wsz = jnp.dtype(w1.dtype).itemsize

    # hb must divide `hidden` exactly: a partial hidden tile would contract
    # garbage weight rows into the accumulator (col axis is a reduction here).
    hb = _pick_col_block(hidden, 2 * dim * wsz, budget)
    resident = (dim * hb + hb * dim) * wsz + (hb + 3 * dim) * 4
    stream = 2 * dim * isz                            # x in + out
    scratch = 2 * dim * 4 + 3 * hb * 4                # ln + acc + live hidden temps
    rb = _pick_row_block(rows, stream, scratch, resident, x2d.dtype, budget)
    grid = (pl.cdiv(rows, rb), hidden // hb)

    g2d = gamma.astype(jnp.float32).reshape(1, dim)
    be2d = beta.astype(jnp.float32).reshape(1, dim)
    b1_2d = b1.astype(jnp.float32).reshape(1, hidden)
    b2_2d = b2.astype(jnp.float32).reshape(1, dim)

    return pl.pallas_call(
        functools.partial(_mlp_kernel, eps=eps),
        out_shape=jax.ShapeDtypeStruct((rows, dim), x2d.dtype),
        grid_spec=pltpu.PrefetchScalarGridSpec(
            num_scalar_prefetch=0,
            grid=grid,
            in_specs=[
                pl.BlockSpec((rb, dim), lambda i, k: (i, 0)),
                pl.BlockSpec((1, dim), lambda i, k: (0, 0)),
                pl.BlockSpec((1, dim), lambda i, k: (0, 0)),
                pl.BlockSpec((dim, hb), lambda i, k: (0, k)),
                pl.BlockSpec((1, hb), lambda i, k: (0, k)),
                pl.BlockSpec((hb, dim), lambda i, k: (k, 0)),
                pl.BlockSpec((1, dim), lambda i, k: (0, 0)),
            ],
            out_specs=pl.BlockSpec((rb, dim), lambda i, k: (i, 0)),
            scratch_shapes=[pltpu.VMEM((rb, dim), jnp.float32),
                            pltpu.VMEM((rb, dim), jnp.float32)],
        ),
        compiler_params=_compiler_params(("parallel", "arbitrary")),
    )(x2d, g2d, be2d, w1, b1_2d, w2, b2_2d)


# ---------------------------------------------------------------------------
# Attention: lane-dense (N, 3C) qkv in, lane-dense (N, C) out, heads looped
# inside the kernel with static slices -> no wrapper-level transposes.
# ---------------------------------------------------------------------------
def _attention_kernel(qkv_ref, o_ref, *, num_heads, scale):
    n, three_c = qkv_ref.shape
    c = three_c // 3
    d = c // num_heads
    for h in range(num_heads):                        # static unrolled loop
        q = qkv_ref[:, h * d:(h + 1) * d].astype(jnp.float32) * scale
        k = qkv_ref[:, c + h * d:c + (h + 1) * d].astype(jnp.float32)
        v = qkv_ref[:, 2 * c + h * d:2 * c + (h + 1) * d].astype(jnp.float32)
        s = jax.lax.dot_general(q, k, (((1,), (1,)), ((), ())),
                                preferred_element_type=jnp.float32)   # (N, N)
        s = s - jnp.max(s, axis=-1, keepdims=True)
        e = jnp.exp(s)
        inv = pl.reciprocal(jnp.sum(e, axis=-1, keepdims=True), approx=False)
        p = e * inv                                   # N reciprocals, not NxN divides
        o = jnp.dot(p, v, preferred_element_type=jnp.float32)
        o_ref[:, h * d:(h + 1) * d] = o.astype(o_ref.dtype)


def attention(qkv, num_heads):
    # TODO(synk): switch to a KV-tiled online-softmax (flash) kernel when N
    # grows beyond ~1-2K (the dense (N,N) f32 scores tile gets VMEM-heavy on
    # v7x); dense per-batch attention is fine at ViT sequence lengths.
    B, N, three_c = qkv.shape
    C = three_c // 3
    assert C % num_heads == 0
    scale = (C // num_heads) ** -0.5
    return pl.pallas_call(
        functools.partial(_attention_kernel, num_heads=num_heads, scale=scale),
        out_shape=jax.ShapeDtypeStruct((B, N, C), qkv.dtype),
        grid_spec=pltpu.PrefetchScalarGridSpec(
            num_scalar_prefetch=0,
            grid=(B,),
            in_specs=[pl.BlockSpec((None, N, three_c), lambda b: (b, 0, 0))],
            out_specs=pl.BlockSpec((None, N, C), lambda b: (b, 0, 0)),
        ),
        compiler_params=_compiler_params(("parallel",)),
    )(qkv)


# ---------------------------------------------------------------------------
# Block forward (composition of the fused Pallas kernels)
# ---------------------------------------------------------------------------
def block_forward(x, params, *, num_heads, eps=1e-5, compute_dtype=None):
    """compute_dtype=jnp.bfloat16 casts weights (MXU inputs follow) with f32
    accumulation; default None keeps parameter dtype (exact f32 path)."""
    B, N, C = x.shape
    rows = B * N
    x2d = x.reshape(rows, C)

    def w(name):
        wt = params[name]
        return wt.astype(compute_dtype) if compute_dtype is not None else wt

    # attn branch: x = x + proj(attn(LN1(x)))
    qkv2d = ln_linear(x2d, params["norm1_g"], params["norm1_b"],
                      w("qkv_w"), params.get("qkv_b", None), eps=eps)
    o2d = attention(qkv2d.reshape(B, N, 3 * C), num_heads).reshape(rows, C)
    x2d = linear_residual(o2d, w("proj_w"), params["proj_b"], x2d)

    # MLP branch: x = x + fc2(GELU(fc1(LN2(x)))) — single fused kernel
    x2d = mlp_block(x2d, params["norm2_g"], params["norm2_b"],
                    w("fc1_w"), params["fc1_b"], w("fc2_w"), params["fc2_b"],
                    eps=eps)
    return x2d.reshape(B, N, C)


# ---------------------------------------------------------------------------
# Pure-JAX reference mirroring the PyTorch module
# ---------------------------------------------------------------------------
def block_ref(x, params, *, num_heads, eps=1e-5):
    def ln(t, g, b):
        mu = jnp.mean(t, axis=-1, keepdims=True)
        var = jnp.mean((t - mu) ** 2, axis=-1, keepdims=True)
        return (t - mu) * jax.lax.rsqrt(var + eps) * g + b

    B, N, C = x.shape
    H = num_heads
    D = C // H

    h = ln(x, params["norm1_g"], params["norm1_b"])
    qkv = h @ params["qkv_w"]
    if params.get("qkv_b", None) is not None:
        qkv = qkv + params["qkv_b"]
    qkv = qkv.reshape(B, N, 3, H, D).transpose(2, 0, 3, 1, 4)
    q, k, v = qkv[0], qkv[1], qkv[2]                           # (B, H, N, D)
    attn = jnp.einsum("bhnd,bhmd->bhnm", q * D ** -0.5, k)
    attn = jax.nn.softmax(attn, axis=-1)
    o = jnp.einsum("bhnm,bhmd->bhnd", attn, v)
    o = o.transpose(0, 2, 1, 3).reshape(B, N, C)
    x = x + (o @ params["proj_w"] + params["proj_b"])

    h = ln(x, params["norm2_g"], params["norm2_b"])
    h = jax.nn.gelu(h @ params["fc1_w"] + params["fc1_b"], approximate=False)
    x = x + (h @ params["fc2_w"] + params["fc2_b"])
    return x


if __name__ == "__main__":
    key = jax.random.PRNGKey(0)
    B, N, dim, num_heads = 2, 8, 32, 4
    mlp_hidden = int(dim * 4.0)

    ks = jax.random.split(key, 12)

    def init(k, shape, scale):
        return scale * jax.random.normal(k, shape, dtype=jnp.float32)

    params = {
        "norm1_g": 1.0 + 0.1 * jax.random.normal(ks[0], (dim,), jnp.float32),
        "norm1_b": 0.1 * jax.random.normal(ks[1], (dim,), jnp.float32),
        "qkv_w": init(ks[2], (dim, 3 * dim), dim ** -0.5),      # qkv_bias=False
        "proj_w": init(ks[3], (dim, dim), dim ** -0.5),
        "proj_b": 0.1 * jax.random.normal(ks[4], (dim,), jnp.float32),
        "norm2_g": 1.0 + 0.1 * jax.random.normal(ks[5], (dim,), jnp.float32),
        "norm2_b": 0.1 * jax.random.normal(ks[6], (dim,), jnp.float32),
        "fc1_w": init(ks[7], (dim, mlp_hidden), dim ** -0.5),
        "fc1_b": 0.1 * jax.random.normal(ks[8], (mlp_hidden,), jnp.float32),
        "fc2_w": init(ks[9], (mlp_hidden, dim), mlp_hidden ** -0.5),
        "fc2_b": 0.1 * jax.random.normal(ks[10], (dim,), jnp.float32),
    }
    x = jax.random.normal(ks[11], (B, N, dim), dtype=jnp.float32)

    out = block_forward(x, params, num_heads=num_heads)
    out = jax.block_until_ready(out)

    ref = block_ref(x, params, num_heads=num_heads)
    assert out.shape == (B, N, dim)
    max_err = float(jnp.max(jnp.abs(out - ref)))
    assert jnp.allclose(out, ref, atol=1e-4, rtol=1e-4), (
        "mismatch vs reference, max abs err = %e" % max_err)

    print("KERNEL_OK")
</pallas_src>

<mosaic_0001>
module attributes {stable_mosaic.version = 11 : i64} {
  func.func @_ln_linear_nobias_kernel(%arg0: i32, %arg1: i32, %arg2: memref<16x32xf32, #tpu.memory_space<vmem>>, %arg3: memref<1x32xf32, #tpu.memory_space<vmem>>, %arg4: memref<1x32xf32, #tpu.memory_space<vmem>>, %arg5: memref<32x96xf32, #tpu.memory_space<vmem>>, %arg6: memref<16x96xf32, #tpu.memory_space<vmem>>, %arg7: memref<16x32xf32, #tpu.memory_space<vmem>>) attributes {dimension_semantics = [#tpu.dimension_semantics<parallel>, #tpu.dimension_semantics<arbitrary>], iteration_bounds = array<i64: 1, 1>, scalar_prefetch = 0 : i64, scratch_operands = 1 : i64, tpu.core_type = #tpu.core_type<tc>, window_params = [{transform_indices = @transform_0, window_bounds = array<i64: 16, 32>}, {pipeline_mode = #tpu.pipeline_mode<synchronous>, transform_indices = @transform_1, window_bounds = array<i64: 1, 32>}, {pipeline_mode = #tpu.pipeline_mode<synchronous>, transform_indices = @transform_2, window_bounds = array<i64: 1, 32>}, {transform_indices = @transform_3, window_bounds = array<i64: 32, 96>}, {transform_indices = @transform_4, window_bounds = array<i64: 16, 96>}]} {
    %c0_i32 = arith.constant 0 : i32
    %0 = arith.cmpi eq, %arg1, %c0_i32 : i32
    %1 = arith.extui %0 : i1 to i32
    %c0_i32_0 = arith.constant 0 : i32
    %2 = arith.cmpi ne, %1, %c0_i32_0 : i32
    scf.if %2 {
      %c0_6 = arith.constant 0 : index
      %c0_7 = arith.constant 0 : index
      %7 = vector.load %arg2[%c0_6, %c0_7] : memref<16x32xf32, #tpu.memory_space<vmem>>, vector<16x32xf32>
      %c0_8 = arith.constant 0 : index
      %c0_9 = arith.constant 0 : index
      %8 = vector.load %arg3[%c0_8, %c0_9] : memref<1x32xf32, #tpu.memory_space<vmem>>, vector<1x32xf32>
      %c0_10 = arith.constant 0 : index
      %c0_11 = arith.constant 0 : index
      %9 = vector.load %arg4[%c0_10, %c0_11] : memref<1x32xf32, #tpu.memory_space<vmem>>, vector<1x32xf32>
      %cst_12 = arith.constant dense<0.000000e+00> : vector<16xf32>
      %10 = vector.multi_reduction <add>, %7, %cst_12 [1] : vector<16x32xf32> to vector<16xf32>
      %11 = vector.shape_cast %10 : vector<16xf32> to vector<16x1xf32>
      %cst_13 = arith.constant 3.200000e+01 : f32
      %12 = vector.broadcast %cst_13 : f32 to vector<16x1xf32>
      %13 = arith.divf %11, %12 : vector<16x1xf32>
      %14 = vector.broadcast %13 : vector<16x1xf32> to vector<16x32xf32>
      %15 = arith.subf %7, %14 : vector<16x32xf32>
      %16 = arith.mulf %15, %15 : vector<16x32xf32>
      %cst_14 = arith.constant dense<0.000000e+00> : vector<16xf32>
      %17 = vector.multi_reduction <add>, %16, %cst_14 [1] : vector<16x32xf32> to vector<16xf32>
      %18 = vector.shape_cast %17 : vector<16xf32> to vector<16x1xf32>
      %cst_15 = arith.constant 3.200000e+01 : f32
      %19 = vector.broadcast %cst_15 : f32 to vector<16x1xf32>
      %20 = arith.divf %18, %19 : vector<16x1xf32>
      %cst_16 = arith.constant 9.99999974E-6 : f32
      %21 = vector.broadcast %cst_16 : f32 to vector<16x1xf32>
      %22 = arith.addf %20, %21 : vector<16x1xf32>
      %23 = math.rsqrt %22 : vector<16x1xf32>
      %24 = vector.broadcast %23 : vector<16x1xf32> to vector<16x32xf32>
      %25 = arith.mulf %15, %24 : vector<16x32xf32>
      %26 = vector.broadcast %8 : vector<1x32xf32> to vector<16x32xf32>
      %27 = arith.mulf %25, %26 : vector<16x32xf32>
      %28 = vector.broadcast %9 : vector<1x32xf32> to vector<16x32xf32>
      %29 = arith.addf %27, %28 : vector<16x32xf32>
      %c0_17 = arith.constant 0 : index
      %c0_18 = arith.constant 0 : index
      %30 = vector.load %arg7[%c0_17, %c0_18] : memref<16x32xf32, #tpu.memory_space<vmem>>, vector<16x32xf32>
      tpu.vector_store %arg7[%c0_17, %c0_18], %29 {strides = array<i32>} : memref<16x32xf32, #tpu.memory_space<vmem>>, vector<16x32xf32>,
    } else {
    }
    %c0 = arith.constant 0 : index
    %c0_1 = arith.constant 0 : index
    %3 = vector.load %arg7[%c0, %c0_1] : memref<16x32xf32, #tpu.memory_space<vmem>>, vector<16x32xf32>
    %c0_2 = arith.constant 0 : index
    %c0_3 = arith.constant 0 : index
    %4 = vector.load %arg5[%c0_2, %c0_3] : memref<32x96xf32, #tpu.memory_space<vmem>>, vector<32x96xf32>
    %cst = arith.constant dense<0.000000e+00> : vector<16x96xf32>
    %5 = tpu.matmul %3, %4, %cst {dimension_numbers = #tpu.dot_dimension_numbers<[1], [0], [0], [1], [0, 0, 1, 1], [], []>} : vector<16x32xf32>, vector<32x96xf32>, vector<16x96xf32> -> vector<16x96xf32>
    %c0_4 = arith.constant 0 : index
    %c0_5 = arith.constant 0 : index
    %6 = vector.load %arg6[%c0_4, %c0_5] : memref<16x96xf32, #tpu.memory_space<vmem>>, vector<16x96xf32>
    tpu.vector_store %arg6[%c0_4, %c0_5], %5 {strides = array<i32>} : memref<16x96xf32, #tpu.memory_space<vmem>>, vector<16x96xf32>,
    return
  }
  func.func @transform_0(%arg0: i32, %arg1: i32) -> (i32, i32) {
    %c0_i32 = arith.constant 0 : i32
    %c0_i32_0 = arith.constant 0 : i32
    return %arg0, %c0_i32 : i32, i32
  }
  func.func @transform_1(%arg0: i32, %arg1: i32) -> (i32, i32) {
    %c0_i32 = arith.constant 0 : i32
    %c0_i32_0 = arith.constant 0 : i32
    %c0_i32_1 = arith.constant 0 : i32
    return %c0_i32, %c0_i32_0 : i32, i32
  }
  func.func @transform_2(%arg0: i32, %arg1: i32) -> (i32, i32) {
    %c0_i32 = arith.constant 0 : i32
    %c0_i32_0 = arith.constant 0 : i32
    %c0_i32_1 = arith.constant 0 : i32
    return %c0_i32, %c0_i32_0 : i32, i32
  }
  func.func @transform_3(%arg0: i32, %arg1: i32) -> (i32, i32) {
    %c0_i32 = arith.constant 0 : i32
    %c0_i32_0 = arith.constant 0 : i32
    return %c0_i32, %arg1 : i32, i32
  }
  func.func @transform_4(%arg0: i32, %arg1: i32) -> (i32, i32) {
    %c0_i32 = arith.constant 0 : i32
    return %arg0, %arg1 : i32, i32
  }
}

</mosaic_0001>

<llo_original>
// kernel: tpu_custom_call.1
$region0: #{tpu_custom_call.1}
  #allocation0 [shape = 'u32[]', space=smem, size = 0x4, offset = 0x4, fixed_abs, tag = 'smem constant byte address 0x4 - core index']
  #allocation1 [shape = 'u32[144,128]{1,0:T(1,128)}', space=vmem, size = 0x12000, scoped, tag = 'internal scratch']
  #allocation2 [shape = 'f32[16,32]{1,0:T(8,128)}', space=vmem, size = 0x2000, scoped, tag = 'scratch operand']
  %s0 = inlined_call_operand.hbm [shape: f32[16,32], index: 0, kind: input, shape index: {}]
  %s1 = inlined_call_operand.vmem [shape: f32[1,32], index: 1, kind: input, shape index: {}]
  %s2 = inlined_call_operand.vmem [shape: f32[1,32], index: 2, kind: input, shape index: {}]
  %s3 = inlined_call_operand.hbm [shape: f32[32,96], index: 3, kind: input, shape index: {}]
  %s4 = inlined_call_operand.hbm [shape: f32[16,96], index: 4, kind: output, shape index: {}]
  %s5 = sld [smem:[#allocation0]]
  $region38: #{tpu_custom_call.1} parent=0
    _
  %s7 = ssub.s32 1, %s5
  %s8 = scalar_select 0, %s7, %s5
  $region1: #{tpu_custom_call.1} parent=0
    #allocation3 [shape = 'u8[8192]{0}', space=vmem, size = 0x2000, scoped, tag = 'input window, operand 0, single buffered']
    #allocation4 [shape = 's32[1]{0}', space=sflag, size = 0x4, scoped, tag = 'scoped memory for tpu_custom_call.1']
    #allocation5 [shape = 's32[1]{0}', space=sflag, size = 0x4, scoped, tag = 'scoped memory for tpu_custom_call.1']
    #allocation6 [shape = 'u8[16384]{0}', space=vmem, size = 0x4000, scoped, tag = 'input window, operand 3, single buffered']
    #allocation7 [shape = 's32[1]{0}', space=sflag, size = 0x4, scoped, tag = 'scoped memory for tpu_custom_call.1']
    #allocation8 [shape = 'u8[8192]{0}', space=vmem, size = 0x2000, scoped, tag = 'output window, operand 0, single buffered']
    %9 = vsyncpa [#allocation4], 0
    %10 = vsyncpa [#allocation7], 0
    %11 = vsyncpa [#allocation5], 0
    // Predicated region
    $region2: #{tpu_custom_call.1} parent=1 // pred_check
      _
    $region3: #{tpu_custom_call.1} parent=1 // pred_check_branch
      %13 = sbr.rel (0) target = $region5
    $region4: #{tpu_custom_call.1} parent=1 // pred_region
      %s15 = ssub.s32 256, 256
      %16 = vsyncadd [#allocation4], %s15
      %s17 = sshll.u32 [#allocation3], 4
      %s18 = int_to_ptr.vmem [resolvable:$true] %s17
      %23 = dma.hbm_to_vmem [thread:$0]  %s0, 256, %s18, [#allocation4], 128, 128, 8
    $region5: #{tpu_custom_call.1} parent=1 // pred_fallthru
      _
    // Predicated region
    $region6: #{tpu_custom_call.1} parent=1 // pred_check
      _
    $region7: #{tpu_custom_call.1} parent=1 // pred_check_branch
      %25 = sbr.rel (0) target = $region9
    $region8: #{tpu_custom_call.1} parent=1 // pred_region
      _
    $region9: #{tpu_custom_call.1} parent=1 // pred_fallthru
      _
    // Predicated region
    $region10: #{tpu_custom_call.1} parent=1 // pred_check
      _
    $region11: #{tpu_custom_call.1} parent=1 // pred_check_branch
      %27 = sbr.rel (0) target = $region13
    $region12: #{tpu_custom_call.1} parent=1 // pred_region
      _
    $region13: #{tpu_custom_call.1} parent=1 // pred_fallthru
      _
    // Predicated region
    $region14: #{tpu_custom_call.1} parent=1 // pred_check
      _
    $region15: #{tpu_custom_call.1} parent=1 // pred_check_branch
      %29 = sbr.rel (0) target = $region17
    $region16: #{tpu_custom_call.1} parent=1 // pred_region
      %s31 = ssub.s32 512, 512
      %32 = vsyncadd [#allocation7], %s31
      %s33 = sshll.u32 [#allocation6], 4
      %s34 = int_to_ptr.vmem [resolvable:$true] %s33
      %39 = dma.hbm_to_vmem [thread:$0]  %s3, 512, %s34, [#allocation7], 128, 128, 8
    $region17: #{tpu_custom_call.1} parent=1 // pred_fallthru
      _
    // Predicated region
    $region18: #{tpu_custom_call.1} parent=1 // pred_check
      _
    $region19: #{tpu_custom_call.1} parent=1 // pred_check_branch
      %41 = sbr.rel (0) target = $region21
    $region20: #{tpu_custom_call.1} parent=1 // pred_region
      %42 = dma.done [#allocation4], 256
    $region21: #{tpu_custom_call.1} parent=1 // pred_fallthru
      _
    // Predicated region
    $region22: #{tpu_custom_call.1} parent=1 // pred_check
      _
    $region23: #{tpu_custom_call.1} parent=1 // pred_check_branch
      %44 = sbr.rel (0) target = $region25
    $region24: #{tpu_custom_call.1} parent=1 // pred_region
      %45 = dma.done [#allocation7], 512
    $region25: #{tpu_custom_call.1} parent=1 // pred_fallthru
      _
    %p46 = scmp.eq.s32.totalorder 0, 0
    // Predicated region
    $region26: #{tpu_custom_call.1} parent=1 // pred_check
      %p47 = pneg %p46
    $region27: #{tpu_custom_call.1} parent=1 // pred_check_branch
      %49 = sbr.rel (%p47) target = $region29
    $region28: #{tpu_custom_call.1} parent=1 // pred_region
      %v50 = vld [vmem:[#allocation3] sm:$0xff]
      %v51 = vld [vmem:[#allocation3 + $0x8] sm:$0xff]
      %v52 = vld [vmem:[%s1] sm:$0x1]
      %v53 = vld [vmem:[%s2] sm:$0x1]
      %vm54 = vcmask 261120
      %v55 = vsel %vm54, %v50, 0.0
      %56 = vadd.xlane.f32.xlu0 %v55
      %v57 = vpop.xlane.xlu0 %56
      %v58 = vsel %vm54, %v51, 0.0
      %59 = vadd.xlane.f32.xlu0 %v58
      %v60 = vpop.xlane.xlu0 %59
      %v61 = vrcp.pop 32.0
      %v62 = vmul.f32 %v57, %v61
      %v63 = vmul.f32 %v60, %v61
      %v64 = vsub.f32 %v50, %v62
      %v65 = vsub.f32 %v51, %v63
      %v66 = vmul.f32 %v64, %v64
      %v67 = vmul.f32 %v65, %v65
      %v68 = vsel %vm54, %v66, 0.0
      %69 = vadd.xlane.f32.xlu0 %v68
      %v70 = vpop.xlane.xlu0 %69
      %v71 = vsel %vm54, %v67, 0.0
      %72 = vadd.xlane.f32.xlu0 %v71
      %v73 = vpop.xlane.xlu0 %72
      %v74 = vmul.f32 %v70, %v61
      %v75 = vmul.f32 %v73, %v61
      %v76 = vadd.f32 %v74, 1e-05
      %v77 = vadd.f32 %v75, 1e-05
      %v78 = vrsqrt.pop %v76
      %v79 = vrsqrt.pop %v77
      %v80 = vmul.f32 %v64, %v78
      %v81 = vmul.f32 %v65, %v79
      %v83 = vlaneseq
      %v84 = vshrl.u32 %v83, 7
      %v85 = vsub.s32 0, %v84
      %v86 = vrot.slane %v52, %v85
      %v88 = vmul.f32 %v80, %v86
      %v89 = vmul.f32 %v81, %v86
      %v91 = vlaneseq
      %v92 = vshrl.u32 %v91, 7
      %v93 = vsub.s32 0, %v92
      %v94 = vrot.slane %v53, %v93
      %v96 = vadd.f32 %v88, %v94
      %v97 = vadd.f32 %v89, %v94
      %98 = vst.msk [vmem:[#allocation2] sm:$0xff] %vm54, %v96
      %99 = vst.msk [vmem:[#allocation2 + $0x8] sm:$0xff] %vm54, %v97
    $region29: #{tpu_custom_call.1} parent=1 // pred_fallthru
      _
    %v100 = vld [vmem:[#allocation2] sm:$0xff]
    %v101 = vld [vmem:[#allocation2 + $0x8] sm:$0xff]
    %v102 = vld [vmem:[#allocation6] sm:$0xff]
    %v103 = vld [vmem:[#allocation6 + $0x8] sm:$0xff]
    %v104 = vld [vmem:[#allocation6 + $0x10] sm:$0xff]
    %v105 = vld [vmem:[#allocation6 + $0x18] sm:$0xff]
    %vm106 = vcmask 261120
    %v108 = vsel %vm106, %v100, 0
    %v111 = vsel %vm106, %v101, 0
    %113 = vmatprep.subr.mxu0 0.0
    %114 = vmatpush1.msra.mxu0 %v102
    %115 = vmatprep.subr.mxu0 0.0
    %116 = vmatpush1.msra.mxu0 %v103
    %117 = vmatprep.subr.mxu0 0.0
    %118 = vmatpush1.msra.mxu0 %v104
    %119 = vmatprep.subr.mxu0 0.0
    %120 = vmatpush1.msra.mxu0 %v105
    %121 = vmatprep.subr.mxu0 0.0
    %122 = vmatpush1.msra.mxu0 0.0
    %123 = vmatprep.subr.mxu0 0.0
    %124 = vmatpush1.msra.mxu0 0.0
    %125 = vmatprep.subr.mxu0 0.0
    %126 = vmatpush1.msra.mxu0 0.0
    %127 = vmatprep.subr.mxu0 0.0
    %128 = vmatpush1.msra.mxu0 0.0
    %129 = vmatprep.subr.mxu0 0.0
    %130 = vmatpush1.msra.mxu0 0.0
    %131 = vmatprep.subr.mxu0 0.0
    %132 = vmatpush1.msra.mxu0 0.0
    %133 = vmatprep.subr.mxu0 0.0
    %134 = vmatpush1.msra.mxu0 0.0
    %135 = vmatprep.subr.mxu0 0.0
    %136 = vmatpush1.msra.mxu0 0.0
    %137 = vmatprep.subr.mxu0 0.0
    %138 = vmatpush1.msra.mxu0 0.0
    %139 = vmatprep.subr.mxu0 0.0
    %140 = vmatpush1.msra.mxu0 0.0
    %141 = vmatprep.subr.mxu0 0.0
    %142 = vmatpush1.msra.mxu0 0.0
    %143 = vmatprep.subr.mxu0 0.0
    %144 = vmatpush1.msra.mxu0 0.0
    %145 = vmatprep.subr.mxu0 0.0
    %146 = vmatpush1.msra.mxu0 0.0
    %147 = vmatprep.subr.mxu0 0.0
    %148 = vmatpush1.msra.mxu0 0.0
    %149 = vmatprep.subr.mxu0 0.0
    %150 = vmatpush1.msra.mxu0 0.0
    %151 = vmatprep.subr.mxu0 0.0
    %152 = vmatpush1.msra.mxu0 0.0
    %153 = vmatprep.subr.mxu0 0.0
    %154 = vmatpush1.msra.mxu0 0.0
    %155 = vmatprep.subr.mxu0 0.0
    %156 = vmatpush1.msra.mxu0 0.0
    %157 = vmatprep.subr.mxu0 0.0
    %158 = vmatpush1.msra.mxu0 0.0
    %159 = vmatprep.subr.mxu0 0.0
    %160 = vmatpush1.msra.mxu0 0.0
    %161 = vmatprep.subr.mxu0 0.0
    %162 = vmatpush1.msra.mxu0 0.0
    %163 = vmatprep.subr.mxu0 0.0
    %164 = vmatpush1.msra.mxu0 0.0
    %165 = vmatprep.subr.mxu0 0.0
    %166 = vmatpush1.msra.mxu0 0.0
    %167 = vmatprep.subr.mxu0 0.0
    %168 = vmatpush1.msra.mxu0 0.0
    %169 = vmatprep.subr.mxu0 0.0
    %170 = vmatpush1.msra.mxu0 0.0
    %171 = vmatprep.subr.mxu0 0.0
    %172 = vmatpush1.msra.mxu0 0.0
    %173 = vmatprep.subr.mxu0 0.0
    %174 = vmatpush1.msra.mxu0 0.0
    %175 = vmatprep.subr.mxu0 0.0
    %176 = vmatpush1.msra.mxu0 0.0
    %177 = vmatprep.mubr.f32.mxu0 0.0
    %178 = vmatmul.mubr.f32.gmra.mrb[0].mxu0 %v108
    %v179 = vpop.f32.mrb[0].mxu0
    %v180 = vadd.f32 0.0, %v179
    %v181 = vpop.f32.mrb[0].mxu0
    %182 = vmatprep.mubr.f32.mxu0 0.0
    %183 = vmatmul.mubr.f32.gmra.mrb[0].mxu0 %v111
    %v184 = vpop.f32.mrb[0].mxu0
    %v185 = vadd.f32 0.0, %v184
    %v186 = vpop.f32.mrb[0].mxu0
    %187 = vdwg.mxu0
    %vm188 = vcmask 785408
    %189 = vst.msk [vmem:[#allocation8] sm:$0xff] %vm188, %v180
    %190 = vst.msk [vmem:[#allocation8 + $0x8] sm:$0xff] %vm188, %v185
    // Predicated region
    $region30: #{tpu_custom_call.1} parent=1 // pred_check
      _
    $region31: #{tpu_custom_call.1} parent=1 // pred_check_branch
      %192 = sbr.rel (0) target = $region33
    $region32: #{tpu_custom_call.1} parent=1 // pred_region
      %s194 = ssub.s32 256, 256
      %195 = vsyncadd [#allocation5], %s194
      %s196 = sshll.u32 [#allocation8], 4
      %s197 = int_to_ptr.vmem [resolvable:$true] %s196
      %202 = dma.vmem_to_hbm [thread:$0]  %s197, 256, %s4, [#allocation5], 128, 128, 8
    $region33: #{tpu_custom_call.1} parent=1 // pred_fallthru
      _
    // Predicated region
    $region34: #{tpu_custom_call.1} parent=1 // pred_check
      _
    $region35: #{tpu_custom_call.1} parent=1 // pred_check_branch
      %204 = sbr.rel (0) target = $region37
    $region36: #{tpu_custom_call.1} parent=1 // pred_region
      %205 = dma.done [#allocation5], 256
    $region37: #{tpu_custom_call.1} parent=1 // pred_fallthru
      _
    %206 = vsyncpa [#allocation4], 1
    %207 = vsyncpa [#allocation7], 1
    %208 = vsyncpa [#allocation5], 1

</llo_original>
